<compile_context>
chip_gen: v7x
topology: tpu7x:2x2x1
jax: 0.10.0
libtpu: 0.0.40
codegen_flags: <defaults>
</compile_context>

<pallas_src>
import functools

import numpy as np
import jax
import jax.numpy as jnp
from jax import lax
from jax.experimental import pallas as pl
from jax.experimental.pallas import tpu as pltpu

# ---------------- module hyper-parameters (from ClassLoss.__init__) ----------------
NUM_LESION_CLS = 8
MERGE_CLASSES = [[1, 2], [3, 4]]
# torch/numpy indexing `all_class_label[:, np.array(cls) - 1]` (negative indices wrap);
# the % wrap only reproduces that for offsets in [-NUM_LESION_CLS, NUM_LESION_CLS).
for _cls in MERGE_CLASSES:
    for _j in _cls:
        assert -NUM_LESION_CLS <= int(_j) - 1 < NUM_LESION_CLS, "merge index out of wrap range"
MERGE_IDX = [tuple((int(j) - 1) % NUM_LESION_CLS for j in cls) for cls in MERGE_CLASSES]
NUM_OUT_CLS = len(MERGE_IDX)
SIZE_TH = 100.0
# ignore_class_label is unused in the reference forward()  # TODO(synk): kept for parity only


def class_loss_kernel(label_ref, pred_ref, mask_ref, bce_ref, cnt_ref, *, n_inst):
    """Grid step = (batch element b, H tile k).

    label_ref : SMEM (B*n_inst*2,) int32   flattened (instance_id, label) rows
    pred_ref  : VMEM (1, NUM_OUT_CLS) f32  logits for batch element b
    mask_ref  : VMEM (TILE_H, W)           GT instance-id map tile
    bce_ref   : VMEM (1, NUM_OUT_CLS) f32  per-element BCE-with-logits (out)
    cnt_ref   : VMEM (1, NUM_OUT_CLS) f32  merged pixel counts, carried across k
    """
    b = pl.program_id(0)
    k = pl.program_id(1)

    @pl.when(k == 0)
    def _init():
        cnt_ref[...] = jnp.zeros_like(cnt_ref)

    mask = mask_ref[...]
    # in-kernel iota (an op, not a captured constant) used to scatter scalar
    # per-class weights into the (1, NUM_OUT_CLS) lane vector
    lane = lax.broadcasted_iota(jnp.int32, (1, NUM_OUT_CLS), 1)

    def body(n, acc):
        base = (b * n_inst + n) * 2
        inst = label_ref[base]
        lab = label_ref[base + 1]
        valid = jnp.logical_and(lab > 0, lab <= NUM_LESION_CLS).astype(jnp.float32)
        # one compare + one cast + one cross-lane reduce per instance row;
        # compare against inst cast to the mask dtype (supports narrowed masks)
        cnt = jnp.sum((mask == inst.astype(mask.dtype)).astype(jnp.float32))
        # scalar per-output-class weight = merge-group multiplicity of (lab - 1)
        w = jnp.zeros((1, NUM_OUT_CLS), jnp.float32)
        for o, group in enumerate(MERGE_IDX):
            mult = jnp.float32(0.0)
            for j in group:
                mult = mult + (lab - 1 == j).astype(jnp.float32)
            w = jnp.where(lane == o, valid * mult, w)
        return acc + w * cnt

    tile_counts = lax.fori_loop(
        0, n_inst, body, jnp.zeros((1, NUM_OUT_CLS), jnp.float32), unroll=True)
    cnt_ref[...] += tile_counts

    @pl.when(k == pl.num_programs(1) - 1)
    def _finalize():
        x = pred_ref[...]
        # size-threshold clamp + numerically-stable BCE-with-logits; the mean
        # over all B*NUM_OUT_CLS elements is taken outside the kernel so the
        # batch grid axis can shard across TensorCores on v7x.
        y = jnp.minimum(cnt_ref[...] * (1.0 / SIZE_TH), 1.0)
        bce_ref[...] = jnp.maximum(x, 0.0) - x * y + jnp.log1p(jnp.exp(-jnp.abs(x)))


def class_loss_pallas(pred_class, mask_gt, label_gt, *, tile_h=8, vmem_limit_bytes=None):
    bsz, h, w = mask_gt.shape
    n_inst = label_gt.shape[1]
    assert h % tile_h == 0, "tile_h must divide H"
    assert tile_h % 8 == 0 and w % 128 == 0, "mask tiles must respect the (8,128) rule"

    label_flat = label_gt.reshape(-1).astype(jnp.int32)          # 1-D table -> SMEM prefetch
    pred3 = pred_class.reshape(bsz, 1, NUM_OUT_CLS).astype(jnp.float32)

    grid_spec = pltpu.PrefetchScalarGridSpec(
        num_scalar_prefetch=1,                                   # label table -> SMEM
        grid=(bsz, h // tile_h),                                 # batch x H-tile (reduction last)
        in_specs=[
            # pred row: same block across all H tiles of a batch element
            pl.BlockSpec((pl.Squeezed(), 1, NUM_OUT_CLS), lambda b, k, lbl: (b, 0, 0)),
            # mask tile: streams through (TILE_H, W) double-buffered blocks
            pl.BlockSpec((pl.Squeezed(), tile_h, w), lambda b, k, lbl: (b, k, 0)),
        ],
        out_specs=pl.BlockSpec((pl.Squeezed(), 1, NUM_OUT_CLS), lambda b, k, lbl: (b, 0, 0)),
        scratch_shapes=[pltpu.VMEM((1, NUM_OUT_CLS), jnp.float32)],
    )
    bce = pl.pallas_call(
        functools.partial(class_loss_kernel, n_inst=n_inst),
        out_shape=jax.ShapeDtypeStruct((bsz, 1, NUM_OUT_CLS), jnp.float32),
        grid_spec=grid_spec,
        compiler_params=pltpu.CompilerParams(
            dimension_semantics=("parallel", "arbitrary"),       # batch parallel, H reduction
            vmem_limit_bytes=vmem_limit_bytes),
    )(label_flat, pred3, mask_gt)
    # BCEWithLogitsLoss 'mean' reduction over the B*NUM_OUT_CLS per-element values;
    # kept outside the kernel so the batch grid axis can shard across TCs.
    return jnp.mean(bce)


def reference_loss(pred_class, mask_gt, label_gt):
    # pure numpy reproduction of the PyTorch forward
    pred = np.asarray(pred_class, np.float32)
    mask = np.asarray(mask_gt)
    labels = np.asarray(label_gt)
    bsz = pred.shape[0]
    cnts = np.zeros((bsz, NUM_LESION_CLS), np.float32)
    for bb in range(bsz):
        for n in range(labels.shape[1]):
            i, lab = int(labels[bb, n, 0]), int(labels[bb, n, 1])
            if 0 < lab <= NUM_LESION_CLS:
                cnts[bb, lab - 1] += float((mask[bb] == i).sum())
    class_label = np.stack([cnts[:, list(idx)].sum(axis=1) for idx in MERGE_IDX], axis=1)
    class_label = np.minimum(class_label / SIZE_TH, 1.0)
    per = np.maximum(pred, 0.0) - pred * class_label + np.log1p(np.exp(-np.abs(pred)))
    return per.mean()


if __name__ == "__main__":
    B, H, W, N_INST = 2, 16, 128, 4           # toy shapes; grid = (2 batch, 2 H-tiles)

    key = jax.random.PRNGKey(0)
    k_pred, k_mask, k_inst, k_lab = jax.random.split(key, 4)

    pred_class = jax.random.normal(k_pred, (B, NUM_OUT_CLS), dtype=jnp.float32)
    mask_gt = jax.random.randint(k_mask, (B, H, W), 0, 6, dtype=jnp.int32)
    inst_ids = jax.random.randint(k_inst, (B, N_INST, 1), 0, 6, dtype=jnp.int32)
    lesion_labels = jax.random.randint(k_lab, (B, N_INST, 1), 0, NUM_LESION_CLS + 3,
                                       dtype=jnp.int32)  # includes some invalid labels
    label_gt = jnp.concatenate([inst_ids, lesion_labels], axis=-1)  # (B, N, 2)

    loss = class_loss_pallas(pred_class, mask_gt, label_gt, tile_h=8)
    loss = jax.block_until_ready(loss)

    ref = reference_loss(pred_class, mask_gt, label_gt)
    assert np.allclose(np.asarray(loss), ref, rtol=1e-5, atol=1e-5), (np.asarray(loss), ref)
    print("KERNEL_OK")
</pallas_src>

<mosaic_0001>
module attributes {stable_mosaic.version = 11 : i64} {
  func.func @class_loss_kernel(%arg0: i32, %arg1: i32, %arg2: memref<16xi32, #tpu.memory_space<smem>>, %arg3: memref<1x1x2xf32, #tpu.memory_space<vmem>>, %arg4: memref<1x8x128xi32, #tpu.memory_space<vmem>>, %arg5: memref<1x1x2xf32, #tpu.memory_space<vmem>>, %arg6: memref<1x2xf32, #tpu.memory_space<vmem>>) attributes {dimension_semantics = [#tpu.dimension_semantics<parallel>, #tpu.dimension_semantics<arbitrary>], iteration_bounds = array<i64: 2, 2>, scalar_prefetch = 1 : i64, scratch_operands = 1 : i64, tpu.core_type = #tpu.core_type<tc>, window_params = [{transform_indices = @transform_0, window_bounds = array<i64: 1, 1, 2>}, {transform_indices = @transform_1, window_bounds = array<i64: 1, 8, 128>}, {transform_indices = @transform_2, window_bounds = array<i64: 1, 1, 2>}]} {
    %c0_i32 = arith.constant 0 : i32
    %0 = arith.cmpi eq, %arg1, %c0_i32 : i32
    %1 = arith.extui %0 : i1 to i32
    %c0_i32_0 = arith.constant 0 : i32
    %2 = arith.cmpi ne, %1, %c0_i32_0 : i32
    scf.if %2 {
      %cst_85 = arith.constant 0.000000e+00 : f32
      %233 = vector.broadcast %cst_85 : f32 to vector<1x2xf32>
      %c0_86 = arith.constant 0 : index
      %c0_87 = arith.constant 0 : index
      %234 = vector.load %arg6[%c0_86, %c0_87] : memref<1x2xf32, #tpu.memory_space<vmem>>, vector<1x2xf32>
      tpu.vector_store %arg6[%c0_86, %c0_87], %233 {strides = array<i32>} : memref<1x2xf32, #tpu.memory_space<vmem>>, vector<1x2xf32>,
    } else {
    }
    %c0 = arith.constant 0 : index
    %c0_1 = arith.constant 0 : index
    %c0_2 = arith.constant 0 : index
    %3 = vector.load %arg4[%c0, %c0_1, %c0_2] : memref<1x8x128xi32, #tpu.memory_space<vmem>>, vector<1x8x128xi32>
    %4 = vector.shape_cast %3 : vector<1x8x128xi32> to vector<8x128xi32>
    %5 = tpu.iota {dimensions = array<i32: 1>} : vector<1x2xi32>
    %cst = arith.constant 0.000000e+00 : f32
    %6 = vector.broadcast %cst : f32 to vector<1x2xf32>
    %c0_i32_3 = arith.constant 0 : i32
    %c4_i32 = arith.constant 4 : i32
    %7 = arith.muli %arg0, %c4_i32 : i32
    %8 = arith.addi %7, %c0_i32_3 : i32
    %c2_i32 = arith.constant 2 : i32
    %9 = arith.muli %8, %c2_i32 : i32
    %10 = arith.index_cast %9 : i32 to index
    %11 = memref.load %arg2[%10] : memref<16xi32, #tpu.memory_space<smem>>
    %c1_i32 = arith.constant 1 : i32
    %12 = arith.addi %9, %c1_i32 : i32
    %13 = arith.index_cast %12 : i32 to index
    %14 = memref.load %arg2[%13] : memref<16xi32, #tpu.memory_space<smem>>
    %c0_i32_4 = arith.constant 0 : i32
    %15 = arith.cmpi sgt, %14, %c0_i32_4 : i32
    %c8_i32 = arith.constant 8 : i32
    %16 = arith.cmpi sle, %14, %c8_i32 : i32
    %17 = arith.andi %15, %16 : i1
    %18 = arith.extui %17 : i1 to i32
    %19 = arith.sitofp %18 : i32 to f32
    %20 = vector.broadcast %11 : i32 to vector<8x128xi32>
    %21 = arith.cmpi eq, %4, %20 : vector<8x128xi32>
    %22 = arith.extui %21 : vector<8x128xi1> to vector<8x128xi32>
    %23 = arith.sitofp %22 : vector<8x128xi32> to vector<8x128xf32>
    %24 = vector.shape_cast %23 : vector<8x128xf32> to vector<1x8x128xf32>
    %cst_5 = arith.constant dense<0.000000e+00> : vector<1xf32>
    %25 = vector.multi_reduction <add>, %24, %cst_5 [1, 2] : vector<1x8x128xf32> to vector<1xf32>
    %26 = vector.shape_cast %25 : vector<1xf32> to vector<1x1x1xf32>
    %27 = vector.extract %26[0, 0, 0] : f32 from vector<1x1x1xf32>
    %cst_6 = arith.constant 0.000000e+00 : f32
    %28 = vector.broadcast %cst_6 : f32 to vector<1x2xf32>
    %c1_i32_7 = arith.constant 1 : i32
    %29 = arith.subi %14, %c1_i32_7 : i32
    %c0_i32_8 = arith.constant 0 : i32
    %30 = arith.cmpi eq, %29, %c0_i32_8 : i32
    %31 = arith.extui %30 : i1 to i32
    %32 = arith.sitofp %31 : i32 to f32
    %cst_9 = arith.constant 0.000000e+00 : f32
    %33 = arith.addf %cst_9, %32 : f32
    %c1_i32_10 = arith.constant 1 : i32
    %34 = arith.subi %14, %c1_i32_10 : i32
    %c1_i32_11 = arith.constant 1 : i32
    %35 = arith.cmpi eq, %34, %c1_i32_11 : i32
    %36 = arith.extui %35 : i1 to i32
    %37 = arith.sitofp %36 : i32 to f32
    %38 = arith.addf %33, %37 : f32
    %c0_i32_12 = arith.constant 0 : i32
    %39 = vector.broadcast %c0_i32_12 : i32 to vector<1x2xi32>
    %40 = arith.cmpi eq, %5, %39 : vector<1x2xi32>
    %41 = arith.mulf %19, %38 : f32
    %42 = vector.broadcast %41 : f32 to vector<1x2xf32>
    %43 = arith.select %40, %42, %28 : vector<1x2xi1>, vector<1x2xf32>
    %c1_i32_13 = arith.constant 1 : i32
    %44 = arith.subi %14, %c1_i32_13 : i32
    %c2_i32_14 = arith.constant 2 : i32
    %45 = arith.cmpi eq, %44, %c2_i32_14 : i32
    %46 = arith.extui %45 : i1 to i32
    %47 = arith.sitofp %46 : i32 to f32
    %cst_15 = arith.constant 0.000000e+00 : f32
    %48 = arith.addf %cst_15, %47 : f32
    %c1_i32_16 = arith.constant 1 : i32
    %49 = arith.subi %14, %c1_i32_16 : i32
    %c3_i32 = arith.constant 3 : i32
    %50 = arith.cmpi eq, %49, %c3_i32 : i32
    %51 = arith.extui %50 : i1 to i32
    %52 = arith.sitofp %51 : i32 to f32
    %53 = arith.addf %48, %52 : f32
    %c1_i32_17 = arith.constant 1 : i32
    %54 = vector.broadcast %c1_i32_17 : i32 to vector<1x2xi32>
    %55 = arith.cmpi eq, %5, %54 : vector<1x2xi32>
    %56 = arith.mulf %19, %53 : f32
    %57 = vector.broadcast %56 : f32 to vector<1x2xf32>
    %58 = arith.select %55, %57, %43 : vector<1x2xi1>, vector<1x2xf32>
    %59 = vector.broadcast %27 : f32 to vector<1x2xf32>
    %60 = arith.mulf %58, %59 : vector<1x2xf32>
    %61 = arith.addf %6, %60 : vector<1x2xf32>
    %c1_i32_18 = arith.constant 1 : i32
    %c4_i32_19 = arith.constant 4 : i32
    %62 = arith.muli %arg0, %c4_i32_19 : i32
    %63 = arith.addi %62, %c1_i32_18 : i32
    %c2_i32_20 = arith.constant 2 : i32
    %64 = arith.muli %63, %c2_i32_20 : i32
    %65 = arith.index_cast %64 : i32 to index
    %66 = memref.load %arg2[%65] : memref<16xi32, #tpu.memory_space<smem>>
    %c1_i32_21 = arith.constant 1 : i32
    %67 = arith.addi %64, %c1_i32_21 : i32
    %68 = arith.index_cast %67 : i32 to index
    %69 = memref.load %arg2[%68] : memref<16xi32, #tpu.memory_space<smem>>
    %c0_i32_22 = arith.constant 0 : i32
    %70 = arith.cmpi sgt, %69, %c0_i32_22 : i32
    %c8_i32_23 = arith.constant 8 : i32
    %71 = arith.cmpi sle, %69, %c8_i32_23 : i32
    %72 = arith.andi %70, %71 : i1
    %73 = arith.extui %72 : i1 to i32
    %74 = arith.sitofp %73 : i32 to f32
    %75 = vector.broadcast %66 : i32 to vector<8x128xi32>
    %76 = arith.cmpi eq, %4, %75 : vector<8x128xi32>
    %77 = arith.extui %76 : vector<8x128xi1> to vector<8x128xi32>
    %78 = arith.sitofp %77 : vector<8x128xi32> to vector<8x128xf32>
    %79 = vector.shape_cast %78 : vector<8x128xf32> to vector<1x8x128xf32>
    %cst_24 = arith.constant dense<0.000000e+00> : vector<1xf32>
    %80 = vector.multi_reduction <add>, %79, %cst_24 [1, 2] : vector<1x8x128xf32> to vector<1xf32>
    %81 = vector.shape_cast %80 : vector<1xf32> to vector<1x1x1xf32>
    %82 = vector.extract %81[0, 0, 0] : f32 from vector<1x1x1xf32>
    %cst_25 = arith.constant 0.000000e+00 : f32
    %83 = vector.broadcast %cst_25 : f32 to vector<1x2xf32>
    %c1_i32_26 = arith.constant 1 : i32
    %84 = arith.subi %69, %c1_i32_26 : i32
    %c0_i32_27 = arith.constant 0 : i32
    %85 = arith.cmpi eq, %84, %c0_i32_27 : i32
    %86 = arith.extui %85 : i1 to i32
    %87 = arith.sitofp %86 : i32 to f32
    %cst_28 = arith.constant 0.000000e+00 : f32
    %88 = arith.addf %cst_28, %87 : f32
    %c1_i32_29 = arith.constant 1 : i32
    %89 = arith.subi %69, %c1_i32_29 : i32
    %c1_i32_30 = arith.constant 1 : i32
    %90 = arith.cmpi eq, %89, %c1_i32_30 : i32
    %91 = arith.extui %90 : i1 to i32
    %92 = arith.sitofp %91 : i32 to f32
    %93 = arith.addf %88, %92 : f32
    %c0_i32_31 = arith.constant 0 : i32
    %94 = vector.broadcast %c0_i32_31 : i32 to vector<1x2xi32>
    %95 = arith.cmpi eq, %5, %94 : vector<1x2xi32>
    %96 = arith.mulf %74, %93 : f32
    %97 = vector.broadcast %96 : f32 to vector<1x2xf32>
    %98 = arith.select %95, %97, %83 : vector<1x2xi1>, vector<1x2xf32>
    %c1_i32_32 = arith.constant 1 : i32
    %99 = arith.subi %69, %c1_i32_32 : i32
    %c2_i32_33 = arith.constant 2 : i32
    %100 = arith.cmpi eq, %99, %c2_i32_33 : i32
    %101 = arith.extui %100 : i1 to i32
    %102 = arith.sitofp %101 : i32 to f32
    %cst_34 = arith.constant 0.000000e+00 : f32
    %103 = arith.addf %cst_34, %102 : f32
    %c1_i32_35 = arith.constant 1 : i32
    %104 = arith.subi %69, %c1_i32_35 : i32
    %c3_i32_36 = arith.constant 3 : i32
    %105 = arith.cmpi eq, %104, %c3_i32_36 : i32
    %106 = arith.extui %105 : i1 to i32
    %107 = arith.sitofp %106 : i32 to f32
    %108 = arith.addf %103, %107 : f32
    %c1_i32_37 = arith.constant 1 : i32
    %109 = vector.broadcast %c1_i32_37 : i32 to vector<1x2xi32>
    %110 = arith.cmpi eq, %5, %109 : vector<1x2xi32>
    %111 = arith.mulf %74, %108 : f32
    %112 = vector.broadcast %111 : f32 to vector<1x2xf32>
    %113 = arith.select %110, %112, %98 : vector<1x2xi1>, vector<1x2xf32>
    %114 = vector.broadcast %82 : f32 to vector<1x2xf32>
    %115 = arith.mulf %113, %114 : vector<1x2xf32>
    %116 = arith.addf %61, %115 : vector<1x2xf32>
    %c2_i32_38 = arith.constant 2 : i32
    %c4_i32_39 = arith.constant 4 : i32
    %117 = arith.muli %arg0, %c4_i32_39 : i32
    %118 = arith.addi %117, %c2_i32_38 : i32
    %c2_i32_40 = arith.constant 2 : i32
    %119 = arith.muli %118, %c2_i32_40 : i32
    %120 = arith.index_cast %119 : i32 to index
    %121 = memref.load %arg2[%120] : memref<16xi32, #tpu.memory_space<smem>>
    %c1_i32_41 = arith.constant 1 : i32
    %122 = arith.addi %119, %c1_i32_41 : i32
    %123 = arith.index_cast %122 : i32 to index
    %124 = memref.load %arg2[%123] : memref<16xi32, #tpu.memory_space<smem>>
    %c0_i32_42 = arith.constant 0 : i32
    %125 = arith.cmpi sgt, %124, %c0_i32_42 : i32
    %c8_i32_43 = arith.constant 8 : i32
    %126 = arith.cmpi sle, %124, %c8_i32_43 : i32
    %127 = arith.andi %125, %126 : i1
    %128 = arith.extui %127 : i1 to i32
    %129 = arith.sitofp %128 : i32 to f32
    %130 = vector.broadcast %121 : i32 to vector<8x128xi32>
    %131 = arith.cmpi eq, %4, %130 : vector<8x128xi32>
    %132 = arith.extui %131 : vector<8x128xi1> to vector<8x128xi32>
    %133 = arith.sitofp %132 : vector<8x128xi32> to vector<8x128xf32>
    %134 = vector.shape_cast %133 : vector<8x128xf32> to vector<1x8x128xf32>
    %cst_44 = arith.constant dense<0.000000e+00> : vector<1xf32>
    %135 = vector.multi_reduction <add>, %134, %cst_44 [1, 2] : vector<1x8x128xf32> to vector<1xf32>
    %136 = vector.shape_cast %135 : vector<1xf32> to vector<1x1x1xf32>
    %137 = vector.extract %136[0, 0, 0] : f32 from vector<1x1x1xf32>
    %cst_45 = arith.constant 0.000000e+00 : f32
    %138 = vector.broadcast %cst_45 : f32 to vector<1x2xf32>
    %c1_i32_46 = arith.constant 1 : i32
    %139 = arith.subi %124, %c1_i32_46 : i32
    %c0_i32_47 = arith.constant 0 : i32
    %140 = arith.cmpi eq, %139, %c0_i32_47 : i32
    %141 = arith.extui %140 : i1 to i32
    %142 = arith.sitofp %141 : i32 to f32
    %cst_48 = arith.constant 0.000000e+00 : f32
    %143 = arith.addf %cst_48, %142 : f32
    %c1_i32_49 = arith.constant 1 : i32
    %144 = arith.subi %124, %c1_i32_49 : i32
    %c1_i32_50 = arith.constant 1 : i32
    %145 = arith.cmpi eq, %144, %c1_i32_50 : i32
    %146 = arith.extui %145 : i1 to i32
    %147 = arith.sitofp %146 : i32 to f32
    %148 = arith.addf %143, %147 : f32
    %c0_i32_51 = arith.constant 0 : i32
    %149 = vector.broadcast %c0_i32_51 : i32 to vector<1x2xi32>
    %150 = arith.cmpi eq, %5, %149 : vector<1x2xi32>
    %151 = arith.mulf %129, %148 : f32
    %152 = vector.broadcast %151 : f32 to vector<1x2xf32>
    %153 = arith.select %150, %152, %138 : vector<1x2xi1>, vector<1x2xf32>
    %c1_i32_52 = arith.constant 1 : i32
    %154 = arith.subi %124, %c1_i32_52 : i32
    %c2_i32_53 = arith.constant 2 : i32
    %155 = arith.cmpi eq, %154, %c2_i32_53 : i32
    %156 = arith.extui %155 : i1 to i32
    %157 = arith.sitofp %156 : i32 to f32
    %cst_54 = arith.constant 0.000000e+00 : f32
    %158 = arith.addf %cst_54, %157 : f32
    %c1_i32_55 = arith.constant 1 : i32
    %159 = arith.subi %124, %c1_i32_55 : i32
    %c3_i32_56 = arith.constant 3 : i32
    %160 = arith.cmpi eq, %159, %c3_i32_56 : i32
    %161 = arith.extui %160 : i1 to i32
    %162 = arith.sitofp %161 : i32 to f32
    %163 = arith.addf %158, %162 : f32
    %c1_i32_57 = arith.constant 1 : i32
    %164 = vector.broadcast %c1_i32_57 : i32 to vector<1x2xi32>
    %165 = arith.cmpi eq, %5, %164 : vector<1x2xi32>
    %166 = arith.mulf %129, %163 : f32
    %167 = vector.broadcast %166 : f32 to vector<1x2xf32>
    %168 = arith.select %165, %167, %153 : vector<1x2xi1>, vector<1x2xf32>
    %169 = vector.broadcast %137 : f32 to vector<1x2xf32>
    %170 = arith.mulf %168, %169 : vector<1x2xf32>
    %171 = arith.addf %116, %170 : vector<1x2xf32>
    %c3_i32_58 = arith.constant 3 : i32
    %c4_i32_59 = arith.constant 4 : i32
    %172 = arith.muli %arg0, %c4_i32_59 : i32
    %173 = arith.addi %172, %c3_i32_58 : i32
    %c2_i32_60 = arith.constant 2 : i32
    %174 = arith.muli %173, %c2_i32_60 : i32
    %175 = arith.index_cast %174 : i32 to index
    %176 = memref.load %arg2[%175] : memref<16xi32, #tpu.memory_space<smem>>
    %c1_i32_61 = arith.constant 1 : i32
    %177 = arith.addi %174, %c1_i32_61 : i32
    %178 = arith.index_cast %177 : i32 to index
    %179 = memref.load %arg2[%178] : memref<16xi32, #tpu.memory_space<smem>>
    %c0_i32_62 = arith.constant 0 : i32
    %180 = arith.cmpi sgt, %179, %c0_i32_62 : i32
    %c8_i32_63 = arith.constant 8 : i32
    %181 = arith.cmpi sle, %179, %c8_i32_63 : i32
    %182 = arith.andi %180, %181 : i1
    %183 = arith.extui %182 : i1 to i32
    %184 = arith.sitofp %183 : i32 to f32
    %185 = vector.broadcast %176 : i32 to vector<8x128xi32>
    %186 = arith.cmpi eq, %4, %185 : vector<8x128xi32>
    %187 = arith.extui %186 : vector<8x128xi1> to vector<8x128xi32>
    %188 = arith.sitofp %187 : vector<8x128xi32> to vector<8x128xf32>
    %189 = vector.shape_cast %188 : vector<8x128xf32> to vector<1x8x128xf32>
    %cst_64 = arith.constant dense<0.000000e+00> : vector<1xf32>
    %190 = vector.multi_reduction <add>, %189, %cst_64 [1, 2] : vector<1x8x128xf32> to vector<1xf32>
    %191 = vector.shape_cast %190 : vector<1xf32> to vector<1x1x1xf32>
    %192 = vector.extract %191[0, 0, 0] : f32 from vector<1x1x1xf32>
    %cst_65 = arith.constant 0.000000e+00 : f32
    %193 = vector.broadcast %cst_65 : f32 to vector<1x2xf32>
    %c1_i32_66 = arith.constant 1 : i32
    %194 = arith.subi %179, %c1_i32_66 : i32
    %c0_i32_67 = arith.constant 0 : i32
    %195 = arith.cmpi eq, %194, %c0_i32_67 : i32
    %196 = arith.extui %195 : i1 to i32
    %197 = arith.sitofp %196 : i32 to f32
    %cst_68 = arith.constant 0.000000e+00 : f32
    %198 = arith.addf %cst_68, %197 : f32
    %c1_i32_69 = arith.constant 1 : i32
    %199 = arith.subi %179, %c1_i32_69 : i32
    %c1_i32_70 = arith.constant 1 : i32
    %200 = arith.cmpi eq, %199, %c1_i32_70 : i32
    %201 = arith.extui %200 : i1 to i32
    %202 = arith.sitofp %201 : i32 to f32
    %203 = arith.addf %198, %202 : f32
    %c0_i32_71 = arith.constant 0 : i32
    %204 = vector.broadcast %c0_i32_71 : i32 to vector<1x2xi32>
    %205 = arith.cmpi eq, %5, %204 : vector<1x2xi32>
    %206 = arith.mulf %184, %203 : f32
    %207 = vector.broadcast %206 : f32 to vector<1x2xf32>
    %208 = arith.select %205, %207, %193 : vector<1x2xi1>, vector<1x2xf32>
    %c1_i32_72 = arith.constant 1 : i32
    %209 = arith.subi %179, %c1_i32_72 : i32
    %c2_i32_73 = arith.constant 2 : i32
    %210 = arith.cmpi eq, %209, %c2_i32_73 : i32
    %211 = arith.extui %210 : i1 to i32
    %212 = arith.sitofp %211 : i32 to f32
    %cst_74 = arith.constant 0.000000e+00 : f32
    %213 = arith.addf %cst_74, %212 : f32
    %c1_i32_75 = arith.constant 1 : i32
    %214 = arith.subi %179, %c1_i32_75 : i32
    %c3_i32_76 = arith.constant 3 : i32
    %215 = arith.cmpi eq, %214, %c3_i32_76 : i32
    %216 = arith.extui %215 : i1 to i32
    %217 = arith.sitofp %216 : i32 to f32
    %218 = arith.addf %213, %217 : f32
    %c1_i32_77 = arith.constant 1 : i32
    %219 = vector.broadcast %c1_i32_77 : i32 to vector<1x2xi32>
    %220 = arith.cmpi eq, %5, %219 : vector<1x2xi32>
    %221 = arith.mulf %184, %218 : f32
    %222 = vector.broadcast %221 : f32 to vector<1x2xf32>
    %223 = arith.select %220, %222, %208 : vector<1x2xi1>, vector<1x2xf32>
    %224 = vector.broadcast %192 : f32 to vector<1x2xf32>
    %225 = arith.mulf %223, %224 : vector<1x2xf32>
    %226 = arith.addf %171, %225 : vector<1x2xf32>
    %c4_i32_78 = arith.constant 4 : i32
    %c0_79 = arith.constant 0 : index
    %c0_80 = arith.constant 0 : index
    %227 = vector.load %arg6[%c0_79, %c0_80] : memref<1x2xf32, #tpu.memory_space<vmem>>, vector<1x2xf32>
    %228 = arith.addf %227, %226 : vector<1x2xf32>
    %c0_81 = arith.constant 0 : index
    %c0_82 = arith.constant 0 : index
    %229 = vector.load %arg6[%c0_81, %c0_82] : memref<1x2xf32, #tpu.memory_space<vmem>>, vector<1x2xf32>
    tpu.vector_store %arg6[%c0_81, %c0_82], %228 {strides = array<i32>} : memref<1x2xf32, #tpu.memory_space<vmem>>, vector<1x2xf32>,
    %c1_i32_83 = arith.constant 1 : i32
    %230 = arith.cmpi eq, %arg1, %c1_i32_83 : i32
    %231 = arith.extui %230 : i1 to i32
    %c0_i32_84 = arith.constant 0 : i32
    %232 = arith.cmpi ne, %231, %c0_i32_84 : i32
    scf.if %232 {
      %c0_85 = arith.constant 0 : index
      %c0_86 = arith.constant 0 : index
      %c0_87 = arith.constant 0 : index
      %233 = vector.load %arg3[%c0_85, %c0_86, %c0_87] : memref<1x1x2xf32, #tpu.memory_space<vmem>>, vector<1x1x2xf32>
      %234 = vector.shape_cast %233 : vector<1x1x2xf32> to vector<1x2xf32>
      %c0_88 = arith.constant 0 : index
      %c0_89 = arith.constant 0 : index
      %235 = vector.load %arg6[%c0_88, %c0_89] : memref<1x2xf32, #tpu.memory_space<vmem>>, vector<1x2xf32>
      %cst_90 = arith.constant 0.00999999977 : f32
      %236 = vector.broadcast %cst_90 : f32 to vector<1x2xf32>
      %237 = arith.mulf %235, %236 : vector<1x2xf32>
      %cst_91 = arith.constant 1.000000e+00 : f32
      %238 = vector.broadcast %cst_91 : f32 to vector<1x2xf32>
      %239 = arith.minimumf %237, %238 : vector<1x2xf32>
      %cst_92 = arith.constant 0.000000e+00 : f32
      %240 = vector.broadcast %cst_92 : f32 to vector<1x2xf32>
      %241 = arith.maximumf %234, %240 : vector<1x2xf32>
      %242 = arith.mulf %234, %239 : vector<1x2xf32>
      %243 = arith.subf %241, %242 : vector<1x2xf32>
      %244 = math.absf %234 : vector<1x2xf32>
      %cst_93 = arith.constant 0.000000e+00 : f32
      %245 = vector.broadcast %cst_93 : f32 to vector<1x2xf32>
      %246 = arith.subf %245, %244 : vector<1x2xf32>
      %247 = math.exp %246 : vector<1x2xf32>
      %248 = math.log1p %247 : vector<1x2xf32>
      %249 = arith.addf %243, %248 : vector<1x2xf32>
      %c0_94 = arith.constant 0 : index
      %c0_95 = arith.constant 0 : index
      %c0_96 = arith.constant 0 : index
      %250 = vector.load %arg5[%c0_94, %c0_95, %c0_96] : memref<1x1x2xf32, #tpu.memory_space<vmem>>, vector<1x1x2xf32>
      %251 = vector.shape_cast %250 : vector<1x1x2xf32> to vector<1x2xf32>
      %252 = vector.shape_cast %249 : vector<1x2xf32> to vector<1x1x2xf32>
      tpu.vector_store %arg5[%c0_94, %c0_95, %c0_96], %252 {strides = array<i32>} : memref<1x1x2xf32, #tpu.memory_space<vmem>>, vector<1x1x2xf32>,
    } else {
    }
    return
  }
  func.func @transform_0(%arg0: i32, %arg1: i32, %arg2: memref<16xi32, #tpu.memory_space<smem>>) -> (i32, i32, i32) {
    %c0_i32 = arith.constant 0 : i32
    %c0_i32_0 = arith.constant 0 : i32
    %c0_i32_1 = arith.constant 0 : i32
    return %arg0, %c0_i32, %c0_i32_0 : i32, i32, i32
  }
  func.func @transform_1(%arg0: i32, %arg1: i32, %arg2: memref<16xi32, #tpu.memory_space<smem>>) -> (i32, i32, i32) {
    %c0_i32 = arith.constant 0 : i32
    %c0_i32_0 = arith.constant 0 : i32
    return %arg0, %arg1, %c0_i32 : i32, i32, i32
  }
  func.func @transform_2(%arg0: i32, %arg1: i32, %arg2: memref<16xi32, #tpu.memory_space<smem>>) -> (i32, i32, i32) {
    %c0_i32 = arith.constant 0 : i32
    %c0_i32_0 = arith.constant 0 : i32
    %c0_i32_1 = arith.constant 0 : i32
    return %arg0, %c0_i32, %c0_i32_0 : i32, i32, i32
  }
}

</mosaic_0001>

<llo_original>
// kernel: tpu_custom_call.1
$region0: #{tpu_custom_call.1}
  #allocation0 [shape = 'u32[]', space=smem, size = 0x4, offset = 0x4, fixed_abs, tag = 'smem constant byte address 0x4 - core index']
  #allocation1 [shape = 'u32[144,128]{1,0:T(1,128)}', space=vmem, size = 0x12000, scoped, tag = 'internal scratch']
  #allocation2 [shape = 'f32[1,2]{1,0:T(1,128)}', space=vmem, size = 0x200, scoped, tag = 'scratch operand']
  #allocation3 [shape = 's32[1]{0}', space=sflag, size = 0x4, scoped, tag = 'scoped memory for tpu_custom_call.1']
  #allocation4 [shape = 'u8[512]{0}', space=smem, size = 0x200, scoped, tag = 'prefetched SMEM operand 0']
  %s0 = inlined_call_operand.hbm [shape: s32[16], index: 0, kind: input, shape index: {}]
  %s1 = inlined_call_operand.vmem [shape: f32[2,1,2], index: 1, kind: input, shape index: {}]
  %s2 = inlined_call_operand.hbm [shape: s32[2,16,128], index: 2, kind: input, shape index: {}]
  %s3 = inlined_call_operand.hbm [shape: f32[2,1,2], index: 3, kind: output, shape index: {}]
  %s4 = sld [smem:[#allocation0]]
  $region53: #{tpu_custom_call.1} parent=0
    _
  %s6 = ssub.s32 1, %s4
  %s7 = scalar_select 0, %s6, %s4
  %9 = dma.hbm_to_smem %s0, 16, [#allocation4], [#allocation3]
  %10 = dma.done [#allocation3], 16
  %11 = sfence
  $region1: #{tpu_custom_call.1} parent=0
    #allocation5 [shape = 'u8[8192]{0}', space=vmem, size = 0x2000, scoped, tag = 'input window, operand 2']
    #allocation6 [shape = 's32[2]{0}', space=sflag, size = 0x8, scoped, tag = 'scoped memory for tpu_custom_call.1']
    #allocation7 [shape = 's32[2]{0}', space=sflag, size = 0x8, scoped, tag = 'scoped memory for tpu_custom_call.1']
    #allocation8 [shape = 'u8[1024]{0}', space=vmem, size = 0x400, scoped, tag = 'output window, operand 0']
    %12 = vsyncpa [#allocation6], 0
    %s13 = scalar_lea.sflag [#allocation6], 1
    %14 = vsyncpa %s13, 0
    %15 = vsyncpa [#allocation7], 0
    %s16 = scalar_lea.sflag [#allocation7], 1
    %17 = vsyncpa %s16, 0
    loop: start=0, step=1, limit=6
    $region2: #{tpu_custom_call.1} parent=1 // loop_pre_header
      _
    $region3: #{tpu_custom_call.1} parent=1 // loop_header
      %s19 = sphi 0, %s23
      %p20 = scmp.ge.s32.totalorder %s19, 6
      %s26 = sphi 0, %s38
      %s27 = sphi 0, %s34
      %s28 = sphi 0, %s26
      %s29 = sphi 0, %s27
      %s30 = sphi 0, %s28
      %s31 = sphi 0, %s29
      %s41 = sphi 0, %s43
      %s44 = sphi 0, %s41
      %s45 = sphi 0, %s44
      %s61 = sphi 0, %s45
      %s69 = sphi 0, %s71
      %s72 = sphi 0, %s69
      %s73 = sphi 0, %s72
      %s89 = sphi 0, %s73
      %s95 = sphi 0, %s97
      %s98 = sphi 0, %s95
      %s99 = sphi 0, %s98
      %s115 = sphi 0, %s99
    $region4: #{tpu_custom_call.1} parent=1 // loop_header_branch
      %22 = sbr.rel (%p20) target = $region8
    $region5: #{tpu_custom_call.1} parent=1 // loop_body
      %s24 = ssub.s32 %s19, 1
      %s25 = ssub.s32 %s19, 2
      %s32 = sadd.s32 1, %s27
      %p33 = scmp.ge.s32.totalorder %s32, 2
      %s34 = scalar_select %p33, 0, %s32
      %s35 = sadd.s32 1, %s26
      %s36 = scalar_select %p33, %s35, %s26
      %p37 = scmp.ge.s32.totalorder %s36, 2
      %s38 = scalar_select %p37, 0, %s36
      %s39 = ssub.s32 %s26, %s38
      %p40 = scmp.eq.s32.totalorder %s39, 0
      %s42 = sadd.s32 %s41, 1
      %s43 = scalar_select %p40, %s41, %s42
      %p46 = pneg %p40
      %p47 = scmp.eq.s32.totalorder %s19, 3
      %p48 = por %p46, %p47
      %p49 = scmp.ne.s32.totalorder %s41, %s44
      %p50 = scmp.eq.s32.totalorder %s19, 0
      %p51 = por %p49, %p50
      %p52 = scmp.ne.s32.totalorder %s41, %s44
      %p53 = scmp.eq.s32.totalorder %s24, 3
      %p54 = por %p52, %p53
      %p55 = scmp.ne.s32.totalorder %s44, %s45
      %p56 = scmp.eq.s32.totalorder %s24, 0
      %p57 = por %p55, %p56
      %p58 = scmp.ne.s32.totalorder %s44, %s45
      %p59 = scmp.eq.s32.totalorder %s25, 3
      %p60 = por %p58, %p59
      %p62 = scmp.ne.s32.totalorder %s45, %s61
      %p63 = scmp.eq.s32.totalorder %s25, 0
      %p64 = por %p62, %p63
      %s65 = ssub.s32 %s26, %s38
      %s66 = ssub.s32 %s27, %s34
      %s67 = sor.u32 %s65, %s66
      %p68 = scmp.eq.s32.totalorder %s67, 0
      %s70 = sadd.s32 %s69, 1
      %s71 = scalar_select %p68, %s69, %s70
      %p74 = pneg %p68
      %p75 = scmp.eq.s32.totalorder %s19, 3
      %p76 = por %p74, %p75
      %p77 = scmp.ne.s32.totalorder %s69, %s72
      %p78 = scmp.eq.s32.totalorder %s19, 0
      %p79 = por %p77, %p78
      %p80 = scmp.ne.s32.totalorder %s69, %s72
      %p81 = scmp.eq.s32.totalorder %s24, 3
      %p82 = por %p80, %p81
      %p83 = scmp.ne.s32.totalorder %s72, %s73
      %p84 = scmp.eq.s32.totalorder %s24, 0
      %p85 = por %p83, %p84
      %p86 = scmp.ne.s32.totalorder %s72, %s73
      %p87 = scmp.eq.s32.totalorder %s25, 3
      %p88 = por %p86, %p87
      %p90 = scmp.ne.s32.totalorder %s73, %s89
      %p91 = scmp.eq.s32.totalorder %s25, 0
      %p92 = por %p90, %p91
      %s93 = ssub.s32 %s26, %s38
      %p94 = scmp.eq.s32.totalorder %s93, 0
      %s96 = sadd.s32 %s95, 1
      %s97 = scalar_select %p94, %s95, %s96
      %p100 = pneg %p94
      %p101 = scmp.eq.s32.totalorder %s19, 3
      %p102 = por %p100, %p101
      %p103 = scmp.ne.s32.totalorder %s95, %s98
      %p104 = scmp.eq.s32.totalorder %s19, 0
      %p105 = por %p103, %p104
      %p106 = scmp.ne.s32.totalorder %s95, %s98
      %p107 = scmp.eq.s32.totalorder %s24, 3
      %p108 = por %p106, %p107
      %p109 = scmp.ne.s32.totalorder %s98, %s99
      %p110 = scmp.eq.s32.totalorder %s24, 0
      %p111 = por %p109, %p110
      %p112 = scmp.ne.s32.totalorder %s98, %s99
      %p113 = scmp.eq.s32.totalorder %s25, 3
      %p114 = por %p112, %p113
      %p116 = scmp.ne.s32.totalorder %s99, %s115
      %p117 = scmp.eq.s32.totalorder %s25, 0
      %p118 = por %p116, %p117
      %p119 = scmp.le.s32.totalorder 1, %s19
      %p120 = scmp.lt.s32.totalorder %s19, 5
      %p121 = pnand %p119, %p120
      %p122 = pneg %p121
      // Predicated region
      $region9: #{tpu_custom_call.1} parent=5 // pred_check
        _
      $region10: #{tpu_custom_call.1} parent=5 // pred_check_branch
        %124 = sbr.rel (%p121) target = $region12
      $region11: #{tpu_custom_call.1} parent=5 // pred_region
        %s125 = ssub.s32 %s19, 1
      $region12: #{tpu_custom_call.1} parent=5 // pred_fallthru
        _
      %p126 = scmp.lt.s32.totalorder %s19, 4
      // Predicated region
      $region13: #{tpu_custom_call.1} parent=5 // pred_check
        %p127 = pneg %p126
      $region14: #{tpu_custom_call.1} parent=5 // pred_check_branch
        %129 = sbr.rel (%p127) target = $region16
      $region15: #{tpu_custom_call.1} parent=5 // pred_region
        // Predicated region
        $region17: #{tpu_custom_call.1} parent=15 // pred_check
          %p130 = pneg %p51
        $region18: #{tpu_custom_call.1} parent=15 // pred_check_branch
          %132 = sbr.rel (%p130) target = $region20
        $region19: #{tpu_custom_call.1} parent=15 // pred_region
          %p133 = scmp.lt.s32.totalorder %s26, 1
          %s134 = scalar_select %p133, %s26, 1
          %s135 = scalar_lea.vmem %s1, %s134
        $region20: #{tpu_custom_call.1} parent=15 // pred_fallthru
          _
        // Predicated region
        $region21: #{tpu_custom_call.1} parent=15 // pred_check
          %p136 = pneg %p79
        $region22: #{tpu_custom_call.1} parent=15 // pred_check_branch
          %138 = sbr.rel (%p136) target = $region24
        $region23: #{tpu_custom_call.1} parent=15 // pred_region
          %s139 = sand.u32 %s69, 1
          %s140 = scalar_lea.sflag [#allocation6], %s139
          %s141 = sand.u32 %s69, 1
          %s142 = smul.addr %s141, 8
          %s143 = scalar_lea.vmem [#allocation5], %s142
          %s145 = ssub.s32 128, 128
          %146 = vsyncadd %s140, %s145
          %s147 = smul.addr %s26, 2
          %s148 = sadd.s32 %s27, %s147
          %s149 = smul.addr %s148, 128
          %s150 = scalar_lea.hbm %s2, %s149
          %s152 = sshll.u32 %s143, 4
          %s153 = int_to_ptr.vmem [resolvable:$true] %s152
          %155 = dma.hbm_to_vmem [thread:$0]  %s150, 128, %s153, %s140
        $region24: #{tpu_custom_call.1} parent=15 // pred_fallthru
          _
      $region16: #{tpu_custom_call.1} parent=5 // pred_fallthru
        _
      %p156 = scmp.le.s32.totalorder 1, %s19
      %p157 = scmp.lt.s32.totalorder %s19, 5
      %p158 = pnand %p156, %p157
      %p159 = pneg %p158
      // Predicated region
      $region25: #{tpu_custom_call.1} parent=5 // pred_check
        _
      $region26: #{tpu_custom_call.1} parent=5 // pred_check_branch
        %161 = sbr.rel (%p158) target = $region28
      $region27: #{tpu_custom_call.1} parent=5 // pred_region
        %s162 = ssub.s32 %s19, 1
        %s163 = sand.u32 %s72, 1
        %s164 = scalar_lea.sflag [#allocation6], %s163
        %s165 = sand.u32 %s72, 1
        %s166 = smul.addr %s165, 8
        %s167 = scalar_lea.vmem [#allocation5], %s166
        // Predicated region
        $region29: #{tpu_custom_call.1} parent=27 // pred_check
          %p168 = pneg %p85
        $region30: #{tpu_custom_call.1} parent=27 // pred_check_branch
          %170 = sbr.rel (%p168) target = $region32
        $region31: #{tpu_custom_call.1} parent=27 // pred_region
          %171 = dma.done %s164, 128
        $region32: #{tpu_custom_call.1} parent=27 // pred_fallthru
          _
        %p172 = scmp.lt.s32.totalorder %s28, 1
        %s173 = scalar_select %p172, %s28, 1
        %s174 = scalar_lea.vmem %s1, %s173
        %p175 = pneg %p57
        %p176 = pneg %p54
        %s177 = sand.u32 %s72, 1
        %s178 = scalar_lea.sflag [#allocation6], %s177
        %s179 = sand.u32 %s72, 1
        %s180 = smul.addr %s179, 8
        %s181 = scalar_lea.vmem [#allocation5], %s180
        %p182 = pneg %p85
        %p183 = pneg %p82
        %p184 = pneg %p111
        %p185 = pneg %p108
        %s186 = sand.u32 %s98, 1
        %s187 = scalar_lea.sflag [#allocation7], %s186
        %s188 = sand.u32 %s98, 1
        %s189 = scalar_lea.vmem [#allocation8], %s188
        %p190 = scmp.lt.s32.totalorder %s28, 1
        %s191 = scalar_select %p190, %s28, 1
        %s192 = scalar_lea.vmem %s1, %s191
        %p193 = scmp.eq.s32.totalorder %s29, 0
        // Predicated region
        $region33: #{tpu_custom_call.1} parent=27 // pred_check
          %p194 = pneg %p193
        $region34: #{tpu_custom_call.1} parent=27 // pred_check_branch
          %196 = sbr.rel (%p194) target = $region36
        $region35: #{tpu_custom_call.1} parent=27 // pred_region
          %vm197 = vcmask 8192
          %198 = vst.msk [vmem:[#allocation2] sm:$0x1] %vm197, 0.0
        $region36: #{tpu_custom_call.1} parent=27 // pred_fallthru
          _
        %v199 = vld [vmem:[%s167] sm:$0xff]
        %v200 = vlaneseq
        %v201 = vand.u32 %v200, 127
        %s202 = smul.u32 %s28, 8
        %s203 = sld [smem:[#allocation4 + %s202]]
        %s204 = sadd.s32 %s202, 1
        %s205 = sld [smem:[#allocation4 + %s204]]
        %p206 = scmp.gt.s32.totalorder %s205, 0
        %p207 = scmp.le.s32.totalorder %s205, 8
        %p208 = pnand %p206, %p207
        %p209 = pneg %p208
        %s210 = scalar_select %p209, 1, 0
        %s211 = scvt.s32.f32 %s210
        %v212 = vstv %s203
        %vm213 = vcmp.eq.s32.totalorder %v199, %v212
        %v214 = vsel %vm213, 1, 0
        %v215 = vcvt.s32.f32 %v214
        %216 = vadd.xlane.f32.xlu0 %v215
        %v217 = vpop.xlane.xlu0 %216
        %v218 = vrot.slane %v217, 4
        %v219 = vadd.f32 %v217, %v218
        %v220 = vrot.slane %v219, 2
        %v221 = vadd.f32 %v219, %v220
        %v222 = vrot.slane %v221, 1
        %v223 = vadd.f32 %v221, %v222
        %s224 = vtos %v223
        %s225 = ssub.s32 %s205, 1
        %p226 = scmp.eq.s32.totalorder %s225, 0
        %s227 = scalar_select %p226, 1, 0
        %s228 = scvt.s32.f32 %s227
        %s229 = sadd.f32 %s228, 0.0
        %p230 = scmp.eq.s32.totalorder %s225, 1
        %s231 = scalar_select %p230, 1, 0
        %s232 = scvt.s32.f32 %s231
        %s233 = sadd.f32 %s229, %s232
        %vm234 = vcmp.eq.s32.totalorder %v201, 0
        %s235 = smul.f32 %s211, %s233
        %v236 = vstv %s235
        %v237 = vsel %vm234, %v236, 0.0
        %p238 = scmp.eq.s32.totalorder %s225, 2
        %s239 = scalar_select %p238, 1, 0
        %s240 = scvt.s32.f32 %s239
        %s241 = sadd.f32 %s240, 0.0
        %p242 = scmp.eq.s32.totalorder %s225, 3
        %s243 = scalar_select %p242, 1, 0
        %s244 = scvt.s32.f32 %s243
        %s245 = sadd.f32 %s241, %s244
        %vm246 = vcmp.eq.s32.totalorder %v201, 1
        %s247 = smul.f32 %s211, %s245
        %v248 = vstv %s247
        %v249 = vsel %vm246, %v248, %v237
        %v250 = vstv %s224
        %v251 = vmul.f32 %v249, %v250
        %v252 = vadd.f32 %v251, 0.0
        %s253 = smul.u32 %s28, 4
        %s254 = sadd.s32 %s253, 1
        %s255 = smul.u32 %s254, 2
        %s256 = sld [smem:[#allocation4 + %s255]]
        %s257 = sadd.s32 %s255, 1
        %s258 = sld [smem:[#allocation4 + %s257]]
        %p259 = scmp.gt.s32.totalorder %s258, 0
        %p260 = scmp.le.s32.totalorder %s258, 8
        %p261 = pnand %p259, %p260
        %p262 = pneg %p261
        %s263 = scalar_select %p262, 1, 0
        %s264 = scvt.s32.f32 %s263
        %v265 = vstv %s256
        %vm266 = vcmp.eq.s32.totalorder %v199, %v265
        %v267 = vsel %vm266, 1, 0
        %v268 = vcvt.s32.f32 %v267
        %269 = vadd.xlane.f32.xlu0 %v268
        %v270 = vpop.xlane.xlu0 %269
        %v271 = vrot.slane %v270, 4
        %v272 = vadd.f32 %v270, %v271
        %v273 = vrot.slane %v272, 2
        %v274 = vadd.f32 %v272, %v273
        %v275 = vrot.slane %v274, 1
        %v276 = vadd.f32 %v274, %v275
        %s277 = vtos %v276
        %s278 = ssub.s32 %s258, 1
        %p279 = scmp.eq.s32.totalorder %s278, 0
        %s280 = scalar_select %p279, 1, 0
        %s281 = scvt.s32.f32 %s280
        %s282 = sadd.f32 %s281, 0.0
        %p283 = scmp.eq.s32.totalorder %s278, 1
        %s284 = scalar_select %p283, 1, 0
        %s285 = scvt.s32.f32 %s284
        %s286 = sadd.f32 %s282, %s285
        %s287 = smul.f32 %s264, %s286
        %v288 = vstv %s287
        %v289 = vsel %vm234, %v288, 0.0
        %p290 = scmp.eq.s32.totalorder %s278, 2
        %s291 = scalar_select %p290, 1, 0
        %s292 = scvt.s32.f32 %s291
        %s293 = sadd.f32 %s292, 0.0
        %p294 = scmp.eq.s32.totalorder %s278, 3
        %s295 = scalar_select %p294, 1, 0
        %s296 = scvt.s32.f32 %s295
        %s297 = sadd.f32 %s293, %s296
        %s298 = smul.f32 %s264, %s297
        %v299 = vstv %s298
        %v300 = vsel %vm246, %v299, %v289
        %v301 = vstv %s277
        %v302 = vmul.f32 %v300, %v301
        %v303 = vadd.f32 %v252, %v302
        %s304 = sadd.s32 %s253, 2
        %s305 = smul.u32 %s304, 2
        %s306 = sld [smem:[#allocation4 + %s305]]
        %s307 = sadd.s32 %s305, 1
        %s308 = sld [smem:[#allocation4 + %s307]]
        %p309 = scmp.gt.s32.totalorder %s308, 0
        %p310 = scmp.le.s32.totalorder %s308, 8
        %p311 = pnand %p309, %p310
        %p312 = pneg %p311
        %s313 = scalar_select %p312, 1, 0
        %s314 = scvt.s32.f32 %s313
        %v315 = vstv %s306
        %vm316 = vcmp.eq.s32.totalorder %v199, %v315
        %v317 = vsel %vm316, 1, 0
        %v318 = vcvt.s32.f32 %v317
        %319 = vadd.xlane.f32.xlu0 %v318
        %v320 = vpop.xlane.xlu0 %319
        %v321 = vrot.slane %v320, 4
        %v322 = vadd.f32 %v320, %v321
        %v323 = vrot.slane %v322, 2
        %v324 = vadd.f32 %v322, %v323
        %v325 = vrot.slane %v324, 1
        %v326 = vadd.f32 %v324, %v325
        %s327 = vtos %v326
        %s328 = ssub.s32 %s308, 1
        %p329 = scmp.eq.s32.totalorder %s328, 0
        %s330 = scalar_select %p329, 1, 0
        %s331 = scvt.s32.f32 %s330
        %s332 = sadd.f32 %s331, 0.0
        %p333 = scmp.eq.s32.totalorder %s328, 1
        %s334 = scalar_select %p333, 1, 0
        %s335 = scvt.s32.f32 %s334
        %s336 = sadd.f32 %s332, %s335
        %s337 = smul.f32 %s314, %s336
        %v338 = vstv %s337
        %v339 = vsel %vm234, %v338, 0.0
        %p340 = scmp.eq.s32.totalorder %s328, 2
        %s341 = scalar_select %p340, 1, 0
        %s342 = scvt.s32.f32 %s341
        %s343 = sadd.f32 %s342, 0.0
        %p344 = scmp.eq.s32.totalorder %s328, 3
        %s345 = scalar_select %p344, 1, 0
        %s346 = scvt.s32.f32 %s345
        %s347 = sadd.f32 %s343, %s346
        %s348 = smul.f32 %s314, %s347
        %v349 = vstv %s348
        %v350 = vsel %vm246, %v349, %v339
        %v351 = vstv %s327
        %v352 = vmul.f32 %v350, %v351
        %v353 = vadd.f32 %v303, %v352
        %s354 = sadd.s32 %s253, 3
        %s355 = smul.u32 %s354, 2
        %s356 = sld [smem:[#allocation4 + %s355]]
        %s357 = sadd.s32 %s355, 1
        %s358 = sld [smem:[#allocation4 + %s357]]
        %p359 = scmp.gt.s32.totalorder %s358, 0
        %p360 = scmp.le.s32.totalorder %s358, 8
        %p361 = pnand %p359, %p360
        %p362 = pneg %p361
        %s363 = scalar_select %p362, 1, 0
        %s364 = scvt.s32.f32 %s363
        %v365 = vstv %s356
        %vm366 = vcmp.eq.s32.totalorder %v199, %v365
        %v367 = vsel %vm366, 1, 0
        %v368 = vcvt.s32.f32 %v367
        %369 = vadd.xlane.f32.xlu0 %v368
        %v370 = vpop.xlane.xlu0 %369
        %v371 = vrot.slane %v370, 4
        %v372 = vadd.f32 %v370, %v371
        %v373 = vrot.slane %v372, 2
        %v374 = vadd.f32 %v372, %v373
        %v375 = vrot.slane %v374, 1
        %v376 = vadd.f32 %v374, %v375
        %s377 = vtos %v376
        %s378 = ssub.s32 %s358, 1
        %p379 = scmp.eq.s32.totalorder %s378, 0
        %s380 = scalar_select %p379, 1, 0
        %s381 = scvt.s32.f32 %s380
        %s382 = sadd.f32 %s381, 0.0
        %p383 = scmp.eq.s32.totalorder %s378, 1
        %s384 = scalar_select %p383, 1, 0
        %s385 = scvt.s32.f32 %s384
        %s386 = sadd.f32 %s382, %s385
        %s387 = smul.f32 %s364, %s386
        %v388 = vstv %s387
        %v389 = vsel %vm234, %v388, 0.0
        %p390 = scmp.eq.s32.totalorder %s378, 2
        %s391 = scalar_select %p390, 1, 0
        %s392 = scvt.s32.f32 %s391
        %s393 = sadd.f32 %s392, 0.0
        %p394 = scmp.eq.s32.totalorder %s378, 3
        %s395 = scalar_select %p394, 1, 0
        %s396 = scvt.s32.f32 %s395
        %s397 = sadd.f32 %s393, %s396
        %s398 = smul.f32 %s364, %s397
        %v399 = vstv %s398
        %v400 = vsel %vm246, %v399, %v389
        %v401 = vstv %s377
        %v402 = vmul.f32 %v400, %v401
        %v403 = vadd.f32 %v353, %v402
        %v404 = vld [vmem:[#allocation2] sm:$0x1]
        %v405 = vadd.f32 %v404, %v403
        %vm406 = vcmask 8192
        %407 = vst.msk [vmem:[#allocation2] sm:$0x1] %vm406, %v405
        %p408 = scmp.eq.s32.totalorder %s29, 1
        // Predicated region
        $region37: #{tpu_custom_call.1} parent=27 // pred_check
          %p409 = pneg %p408
        $region38: #{tpu_custom_call.1} parent=27 // pred_check_branch
          %411 = sbr.rel (%p409) target = $region40
        $region39: #{tpu_custom_call.1} parent=27 // pred_region
          %v412 = vld [vmem:[%s192] sm:$0x1]
          %v413 = vld [vmem:[#allocation2] sm:$0x1]
          %v414 = vmul.f32 %v413, 0.01
          %v415 = vmin.f32 %v414, 1.0
          %v416 = vmax.f32 %v412, 0.0
          %v417 = vmul.f32 %v412, %v415
          %v418 = vsub.f32 %v416, %v417
          %v419 = vand.u32 2147483647, %v412
          %v420 = vsub.f32 0.0, %v419
          %v421 = vmul.f32 %v420, 1.442695
          %v422 = vpow.pop %v421
          %v423 = vadd.f32 %v422, 1.0
          %v424 = vlog2.pop %v423
          %v425 = vmul.f32 %v424, 0.6931472
          %v426 = vmul.f32 -0.5, %v422
          %v427 = vadd.f32 %v426, 1.0
          %v428 = vmul.f32 %v427, %v422
          %v429 = vand.u32 2147483647, %v422
          %vm430 = vcmp.lt.f32.partialorder %v429, 0.0004427343
          %v431 = vsel %vm430, %v428, %v425
          %v432 = vadd.f32 %v418, %v431
          %433 = vst.msk [vmem:[%s189] sm:$0x1] %vm406, %v432
        $region40: #{tpu_custom_call.1} parent=27 // pred_fallthru
          _
        %s434 = sand.u32 %s98, 1
        %s435 = scalar_lea.sflag [#allocation7], %s434
        %s436 = sand.u32 %s98, 1
        %s437 = scalar_lea.vmem [#allocation8], %s436
        // Predicated region
        $region41: #{tpu_custom_call.1} parent=27 // pred_check
          %p438 = pneg %p108
        $region42: #{tpu_custom_call.1} parent=27 // pred_check_branch
          %440 = sbr.rel (%p438) target = $region44
        $region43: #{tpu_custom_call.1} parent=27 // pred_region
          %s442 = ssub.s32 16, 16
          %443 = vsyncadd %s435, %s442
          %s444 = smul.addr %s28, 16
          %s445 = scalar_lea.hbm %s3, %s444
          %s447 = sshll.u32 %s437, 4
          %s448 = int_to_ptr.vmem [resolvable:$true] %s447
          %450 = dma.vmem_to_hbm [thread:$0]  %s448, 16, %s445, %s435
        $region44: #{tpu_custom_call.1} parent=27 // pred_fallthru
          _
      $region28: #{tpu_custom_call.1} parent=5 // pred_fallthru
        _
      %p451 = scmp.le.s32.totalorder 2, %s19
      // Predicated region
      $region45: #{tpu_custom_call.1} parent=5 // pred_check
        %p452 = pneg %p451
      $region46: #{tpu_custom_call.1} parent=5 // pred_check_branch
        %454 = sbr.rel (%p452) target = $region48
      $region47: #{tpu_custom_call.1} parent=5 // pred_region
        %s455 = ssub.s32 %s19, 2
        // Predicated region
        $region49: #{tpu_custom_call.1} parent=47 // pred_check
          %p456 = pneg %p114
        $region50: #{tpu_custom_call.1} parent=47 // pred_check_branch
          %458 = sbr.rel (%p456) target = $region52
        $region51: #{tpu_custom_call.1} parent=47 // pred_region
          %s459 = sand.u32 %s99, 1
          %s460 = scalar_lea.sflag [#allocation7], %s459
          %s461 = sand.u32 %s99, 1
          %s462 = scalar_lea.vmem [#allocation8], %s461
          %463 = dma.done %s460, 16
        $region52: #{tpu_custom_call.1} parent=47 // pred_fallthru
          _
      $region48: #{tpu_custom_call.1} parent=5 // pred_fallthru
        _
    $region6: #{tpu_custom_call.1} parent=1 // loop_footer
      %s23 = sadd.s32 1, %s19
    $region7: #{tpu_custom_call.1} parent=1 // loop_footer_branch
      %18 = sbr.rel target = $region3
    $region8: #{tpu_custom_call.1} parent=1 // loop_exit
      _
    %464 = vsyncpa [#allocation6], 1
    %s465 = scalar_lea.sflag [#allocation6], 1
    %466 = vsyncpa %s465, 1
    %467 = vsyncpa [#allocation7], 1
    %s468 = scalar_lea.sflag [#allocation7], 1
    %469 = vsyncpa %s468, 1

</llo_original>
